<compile_context>
chip_gen: v5e
topology: v5e:2x2
jax: 0.10.0
libtpu: 0.0.40
codegen_flags: <defaults>
</compile_context>

<pallas_src>
import jax
import jax.numpy as jnp
from jax import lax
from jax.experimental import pallas as pl
from jax.experimental.pallas import tpu as pltpu


def _choose_tiling(HW_pad, C, target_px):
    """Pick (G, tn): G spatial chunks of tn lanes are processed per grid step."""
    # G groups fill the MXU contraction/output depth (C*G == 256 when possible).
    G = (256 // C) if (0 < C <= 256 and 256 % C == 0) else 1
    if G > 1 and G % 16 != 0:
        # Keep the in-kernel (C, G, tn) <-> (C*G, tn) reshapes metadata-only
        # (bf16 sublane tile = 16); otherwise fall back to ungrouped matmuls.
        G = 1
    if HW_pad // 128 < G:
        G = 1                      # not enough 128-lane chunks to group
    tn = 128
    for cand in (256, 512, 1024, 2048, 4096, 8192, 16384, 32768):
        if HW_pad % cand == 0 and HW_pad // cand >= G and G * cand <= target_px:
            tn = cand
    return G, tn


def _make_head_kernel(C, G, tn, S):
    """conv1(+BN scale) -> shift+ReLU -> conv2 on one pixel tile."""
    ragged = (G > 1) and (S % G != 0)
    CG = C * G

    def kernel(x_ref, w1_ref, shift_ref, w2_ref, o_ref):
        # x_ref:     (C, G, tn) or (C, tn)   input tile (any float dtype)
        # w1_ref:    (CG, CG)   bf16  kron(scale*W1, I_G)
        # shift_ref: (CG, 1)    f32   folded BN shift (repeated per group)
        # w2_ref:    (CG, CG)   bf16  kron(W2, I_G)
        # o_ref:     same shape as x_ref     output tile
        x = x_ref[...]
        if G > 1:
            if ragged:
                # Zero the groups of the partial tail block that lie past S:
                # kron's zero weight entries would otherwise propagate NaN/Inf
                # garbage from the unwritten part of the input buffer into
                # valid output rows.
                j = pl.program_id(1)
                g_idx = lax.broadcasted_iota(jnp.int32, x.shape, 1)
                x = jnp.where(j * G + g_idx < S, x, 0)
            xg = x.astype(jnp.bfloat16).reshape(CG, tn)
        else:
            xg = x.astype(jnp.bfloat16)                                   # (C, tn)

        h = jnp.dot(w1_ref[...], xg, preferred_element_type=jnp.float32)  # conv1 (+BN scale)
        h = jnp.maximum(h + shift_ref[...], 0.0)                          # BN shift + ReLU (f32)
        o = jnp.dot(w2_ref[...], h.astype(jnp.bfloat16),
                    preferred_element_type=jnp.float32)                   # conv2 (1x1, no bias)
        if G > 1:
            o = o.reshape(C, G, tn)
        o_ref[...] = o.astype(o_ref.dtype)

    return kernel


def contrastive_head(fts_nchw, w1, gamma, beta, run_mean, run_var, w2,
                     eps=1e-5, out_dtype=jnp.bfloat16, target_px_per_step=32768):
    """fts_nchw: (B, C, H, W) unet feature map.  Returns (B, C, H, W)."""
    B, C, H, W = fts_nchw.shape
    HW = H * W

    # Fold BatchNorm2d (inference semantics) into conv1, in f32:
    #   bn(conv1(x)) = (scale[:,None] * W1) @ x + shift
    scale = (gamma / jnp.sqrt(run_var + eps)).astype(jnp.float32)          # (C,)
    shift = (beta - run_mean * scale).astype(jnp.float32)                  # (C,)
    w1_f = w1.reshape(C, C).astype(jnp.float32) * scale[:, None]           # (C, C)
    w2_f = w2.reshape(C, C).astype(jnp.float32)

    # Tiling: spatial axis padded to a multiple of 128 only if needed (rare).
    HW_pad = pl.cdiv(HW, 128) * 128
    G, tn = _choose_tiling(HW_pad, C, target_px_per_step)
    S = HW_pad // tn                                  # spatial chunks of tn lanes

    # Kronecker (block-structured) weights: G independent channel groups per
    # matmul, filling the MXU's 256-deep contraction/output dims.
    eye_g = jnp.eye(G, dtype=jnp.float32)
    w1_big = jnp.kron(w1_f, eye_g).astype(jnp.bfloat16)                    # (C*G, C*G)
    w2_big = jnp.kron(w2_f, eye_g).astype(jnp.bfloat16)                    # (C*G, C*G)
    shift_big = jnp.repeat(shift, G).reshape(C * G, 1)                     # (C*G, 1) f32

    # NCHW -> (B, C, HW): free reshape.  No dtype cast here (done in-kernel).
    x = fts_nchw.reshape(B, C, HW)
    if HW_pad != HW:                                  # only when HW % 128 != 0
        x = jnp.pad(x, ((0, 0), (0, 0), (0, HW_pad - HW)))

    kernel = _make_head_kernel(C, G, tn, S)

    if G > 1:
        x = x.reshape(B, C, S, tn)                    # free split of the lane axis
        grid = (B, pl.cdiv(S, G))
        data_block = (pl.Squeezed(), C, G, tn)
        data_idx = lambda b, j: (b, 0, j, 0)
        out_arr_shape = (B, C, S, tn)
    else:
        grid = (B, S)
        data_block = (pl.Squeezed(), C, tn)
        data_idx = lambda b, j: (b, 0, j)
        out_arr_shape = (B, C, HW_pad)

    out = pl.pallas_call(
        kernel,
        out_shape=jax.ShapeDtypeStruct(out_arr_shape, out_dtype),
        grid_spec=pltpu.PrefetchScalarGridSpec(
            num_scalar_prefetch=0,
            grid=grid,
            in_specs=[
                pl.BlockSpec(data_block, data_idx),                        # x tile
                pl.BlockSpec((C * G, C * G), lambda b, j: (0, 0)),         # w1 (resident)
                pl.BlockSpec((C * G, 1), lambda b, j: (0, 0)),             # bn shift
                pl.BlockSpec((C * G, C * G), lambda b, j: (0, 0)),         # w2 (resident)
            ],
            out_specs=pl.BlockSpec(data_block, data_idx),
        ),
        compiler_params=pltpu.CompilerParams(
            dimension_semantics=("parallel", "parallel")),
    )(x, w1_big, shift_big, w2_big)

    out = out.reshape(B, C, HW_pad)
    if HW_pad != HW:
        out = out[:, :, :HW]
    return out.reshape(B, C, H, W)


def _reference(fts_nchw, w1, gamma, beta, run_mean, run_var, w2, eps=1e-5):
    """Pure-JAX f32 reference for the same forward (eval-mode BN)."""
    B, C, H, W = fts_nchw.shape
    x = fts_nchw.reshape(B, C, H * W).astype(jnp.float32)
    scale = gamma / jnp.sqrt(run_var + eps)
    shift = beta - run_mean * scale
    h = jnp.einsum('oi,bin->bon', w1.reshape(C, C), x)
    h = h * scale[None, :, None] + shift[None, :, None]
    h = jnp.maximum(h, 0.0)
    o = jnp.einsum('oi,bin->bon', w2.reshape(C, C), h)
    return o.reshape(B, C, H, W)


if __name__ == "__main__":
    C = 16                                   # no_filters = 16 (module default)
    key = jax.random.PRNGKey(0)
    k_fts, k_w1, k_w2, k_g, k_b = jax.random.split(key, 5)

    # conv1: Conv2d(C, C, 1, bias=False) -> weight (C, C, 1, 1)
    w1 = 0.1 * jax.random.normal(k_w1, (C, C, 1, 1), dtype=jnp.float32)
    # BatchNorm2d(C) parameters / running stats (non-trivial to exercise the fold).
    gamma = 1.0 + 0.05 * jax.random.normal(k_g, (C,), dtype=jnp.float32)
    beta = 0.05 * jax.random.normal(k_b, (C,), dtype=jnp.float32)
    run_mean = 0.1 * jnp.arange(C, dtype=jnp.float32) / C
    run_var = 1.0 + 0.1 * jnp.arange(C, dtype=jnp.float32) / C
    # conv2: Conv2d(C, C, 1, bias=False)
    w2 = 0.1 * jax.random.normal(k_w2, (C, C, 1, 1), dtype=jnp.float32)

    # Three shapes: tiny (ungrouped path), full MXU-grouped path, ragged-tail path.
    for (B, H, W) in [(2, 16, 16), (2, 64, 64), (1, 48, 48)]:
        fts = jax.random.normal(jax.random.fold_in(k_fts, H),
                                (B, C, H, W), dtype=jnp.float32)
        out = contrastive_head(fts, w1, gamma, beta, run_mean, run_var, w2)
        out = jax.block_until_ready(out)
        ref = _reference(fts, w1, gamma, beta, run_mean, run_var, w2)
        assert out.shape == (B, C, H, W)
        err = float(jnp.max(jnp.abs(out.astype(jnp.float32) - ref)))
        # bf16 operands/output with f32 accumulation -> relaxed tolerance vs f32 ref.
        assert err < 5e-2, f"mismatch vs reference at ({B},{H},{W}): max|err|={err}"

    print("KERNEL_OK")
</pallas_src>

<mosaic_0001>
module attributes {stable_mosaic.version = 11 : i64} {
  func.func @kernel(%arg0: i32, %arg1: i32, %arg2: memref<1x16x256xf32, #tpu.memory_space<vmem>>, %arg3: memref<16x16xbf16, #tpu.memory_space<vmem>>, %arg4: memref<16x1xf32, #tpu.memory_space<vmem>>, %arg5: memref<16x16xbf16, #tpu.memory_space<vmem>>, %arg6: memref<1x16x256xbf16, #tpu.memory_space<vmem>>) attributes {dimension_semantics = [#tpu.dimension_semantics<parallel>, #tpu.dimension_semantics<parallel>], iteration_bounds = array<i64: 2, 1>, scalar_prefetch = 0 : i64, scratch_operands = 0 : i64, tpu.core_type = #tpu.core_type<tc>, window_params = [{transform_indices = @transform_0, window_bounds = array<i64: 1, 16, 256>}, {pipeline_mode = #tpu.pipeline_mode<synchronous>, transform_indices = @transform_1, window_bounds = array<i64: 16, 16>}, {pipeline_mode = #tpu.pipeline_mode<synchronous>, transform_indices = @transform_2, window_bounds = array<i64: 16, 1>}, {pipeline_mode = #tpu.pipeline_mode<synchronous>, transform_indices = @transform_3, window_bounds = array<i64: 16, 16>}, {transform_indices = @transform_4, window_bounds = array<i64: 1, 16, 256>}]} {
    %c0 = arith.constant 0 : index
    %c0_0 = arith.constant 0 : index
    %c0_1 = arith.constant 0 : index
    %0 = vector.load %arg2[%c0, %c0_0, %c0_1] : memref<1x16x256xf32, #tpu.memory_space<vmem>>, vector<1x16x256xf32>
    %1 = vector.shape_cast %0 : vector<1x16x256xf32> to vector<16x256xf32>
    %2 = arith.truncf %1 : vector<16x256xf32> to vector<16x256xbf16>
    %c0_2 = arith.constant 0 : index
    %c0_3 = arith.constant 0 : index
    %3 = vector.load %arg3[%c0_2, %c0_3] : memref<16x16xbf16, #tpu.memory_space<vmem>>, vector<16x16xbf16>
    %cst = arith.constant dense<0.000000e+00> : vector<16x256xf32>
    %4 = tpu.matmul %3, %2, %cst {dimension_numbers = #tpu.dot_dimension_numbers<[1], [0], [0], [1], [0, 0, 1, 1], [], []>} : vector<16x16xbf16>, vector<16x256xbf16>, vector<16x256xf32> -> vector<16x256xf32>
    %c0_4 = arith.constant 0 : index
    %c0_5 = arith.constant 0 : index
    %5 = vector.load %arg4[%c0_4, %c0_5] : memref<16x1xf32, #tpu.memory_space<vmem>>, vector<16x1xf32>
    %6 = vector.broadcast %5 : vector<16x1xf32> to vector<16x256xf32>
    %7 = arith.addf %4, %6 : vector<16x256xf32>
    %cst_6 = arith.constant 0.000000e+00 : f32
    %8 = vector.broadcast %cst_6 : f32 to vector<16x256xf32>
    %9 = arith.maximumf %7, %8 : vector<16x256xf32>
    %c0_7 = arith.constant 0 : index
    %c0_8 = arith.constant 0 : index
    %10 = vector.load %arg5[%c0_7, %c0_8] : memref<16x16xbf16, #tpu.memory_space<vmem>>, vector<16x16xbf16>
    %11 = arith.truncf %9 : vector<16x256xf32> to vector<16x256xbf16>
    %cst_9 = arith.constant dense<0.000000e+00> : vector<16x256xf32>
    %12 = tpu.matmul %10, %11, %cst_9 {dimension_numbers = #tpu.dot_dimension_numbers<[1], [0], [0], [1], [0, 0, 1, 1], [], []>} : vector<16x16xbf16>, vector<16x256xbf16>, vector<16x256xf32> -> vector<16x256xf32>
    %13 = arith.truncf %12 : vector<16x256xf32> to vector<16x256xbf16>
    %c0_10 = arith.constant 0 : index
    %c0_11 = arith.constant 0 : index
    %c0_12 = arith.constant 0 : index
    %14 = vector.load %arg6[%c0_10, %c0_11, %c0_12] : memref<1x16x256xbf16, #tpu.memory_space<vmem>>, vector<1x16x256xbf16>
    %15 = vector.shape_cast %14 : vector<1x16x256xbf16> to vector<16x256xbf16>
    %16 = vector.shape_cast %13 : vector<16x256xbf16> to vector<1x16x256xbf16>
    tpu.vector_store %arg6[%c0_10, %c0_11, %c0_12], %16 {strides = array<i32>} : memref<1x16x256xbf16, #tpu.memory_space<vmem>>, vector<1x16x256xbf16>,
    return
  }
  func.func @transform_0(%arg0: i32, %arg1: i32) -> (i32, i32, i32) {
    %c0_i32 = arith.constant 0 : i32
    %c0_i32_0 = arith.constant 0 : i32
    return %arg0, %c0_i32, %arg1 : i32, i32, i32
  }
  func.func @transform_1(%arg0: i32, %arg1: i32) -> (i32, i32) {
    %c0_i32 = arith.constant 0 : i32
    %c0_i32_0 = arith.constant 0 : i32
    %c0_i32_1 = arith.constant 0 : i32
    return %c0_i32, %c0_i32_0 : i32, i32
  }
  func.func @transform_2(%arg0: i32, %arg1: i32) -> (i32, i32) {
    %c0_i32 = arith.constant 0 : i32
    %c0_i32_0 = arith.constant 0 : i32
    %c0_i32_1 = arith.constant 0 : i32
    return %c0_i32, %c0_i32_0 : i32, i32
  }
  func.func @transform_3(%arg0: i32, %arg1: i32) -> (i32, i32) {
    %c0_i32 = arith.constant 0 : i32
    %c0_i32_0 = arith.constant 0 : i32
    %c0_i32_1 = arith.constant 0 : i32
    return %c0_i32, %c0_i32_0 : i32, i32
  }
  func.func @transform_4(%arg0: i32, %arg1: i32) -> (i32, i32, i32) {
    %c0_i32 = arith.constant 0 : i32
    %c0_i32_0 = arith.constant 0 : i32
    return %arg0, %c0_i32, %arg1 : i32, i32, i32
  }
}

</mosaic_0001>

<llo_original>
// kernel: tpu_custom_call.1
$region0: #{tpu_custom_call.1}
  #allocation0 [shape = 'u32[]', space=smem, size = 0x4, offset = 0x4, fixed_abs, tag = 'smem constant byte address 0x4 - core index']
  #allocation1 [shape = 'u32[72,128]{1,0:T(1,128)}', space=vmem, size = 0x9000, scoped, tag = 'internal scratch']
  %s0 = inlined_call_operand.hbm [shape: f32[2,16,256], index: 0, kind: input, shape index: {}]
  %s1 = inlined_call_operand.vmem [shape: bf16[16,16], index: 1, kind: input, shape index: {}]
  %s2 = inlined_call_operand.vmem [shape: f32[16,1], index: 2, kind: input, shape index: {}]
  %s3 = inlined_call_operand.vmem [shape: bf16[16,16], index: 3, kind: input, shape index: {}]
  %s4 = inlined_call_operand.hbm [shape: bf16[2,16,256], index: 4, kind: output, shape index: {}]
  %s5 = sld [smem:[#allocation0]]
  $region53: #{tpu_custom_call.1} parent=0
    _
  %s7 = ssub.s32 1, %s5
  %s8 = scalar_select 0, %s7, %s5
  $region1: #{tpu_custom_call.1} parent=0
    #allocation2 [shape = 'u8[32768]{0}', space=vmem, size = 0x8000, scoped, tag = 'input window, operand 0']
    #allocation3 [shape = 's32[2]{0}', space=sflag, size = 0x8, scoped, tag = 'scoped memory for tpu_custom_call.1']
    #allocation4 [shape = 's32[2]{0}', space=sflag, size = 0x8, scoped, tag = 'scoped memory for tpu_custom_call.1']
    #allocation5 [shape = 'u8[16384]{0}', space=vmem, size = 0x4000, scoped, tag = 'output window, operand 0']
    %9 = vsyncpa [#allocation3], 0
    %s10 = scalar_lea.sflag [#allocation3], 1
    %11 = vsyncpa %s10, 0
    %12 = vsyncpa [#allocation4], 0
    %s13 = scalar_lea.sflag [#allocation4], 1
    %14 = vsyncpa %s13, 0
    loop: start=0, step=1, limit=4
    $region2: #{tpu_custom_call.1} parent=1 // loop_pre_header
      _
    $region3: #{tpu_custom_call.1} parent=1 // loop_header
      %s16 = sphi 0, %s20
      %p17 = scmp.ge.s32.totalorder %s16, 4
      %s23 = sphi 0, %s35
      %s24 = sphi 0, %s31
      %s25 = sphi 0, %s23
      %s26 = sphi 0, %s24
      %s27 = sphi 0, %s25
      %s28 = sphi 0, %s26
      %s40 = sphi 0, %s42
      %s43 = sphi 0, %s40
      %s44 = sphi 0, %s43
      %s60 = sphi 0, %s44
      %s64 = sphi 0, %s64
      %s66 = sphi 0, %s64
      %s67 = sphi 0, %s66
      %s81 = sphi 0, %s67
      %s85 = sphi 0, %s85
      %s87 = sphi 0, %s85
      %s88 = sphi 0, %s87
      %s102 = sphi 0, %s88
      %s106 = sphi 0, %s106
      %s108 = sphi 0, %s106
      %s109 = sphi 0, %s108
      %s123 = sphi 0, %s109
      %s131 = sphi 0, %s133
      %s134 = sphi 0, %s131
      %s135 = sphi 0, %s134
      %s151 = sphi 0, %s135
    $region4: #{tpu_custom_call.1} parent=1 // loop_header_branch
      %19 = sbr.rel (%p17) target = $region8
    $region5: #{tpu_custom_call.1} parent=1 // loop_body
      %s21 = ssub.s32 %s16, 1
      %s22 = ssub.s32 %s16, 2
      %s29 = sadd.s32 1, %s24
      %p30 = scmp.ge.s32.totalorder %s29, 1
      %s31 = scalar_select %p30, 0, %s29
      %s32 = sadd.s32 1, %s23
      %s33 = scalar_select %p30, %s32, %s23
      %p34 = scmp.ge.s32.totalorder %s33, 2
      %s35 = scalar_select %p34, 0, %s33
      %s36 = ssub.s32 %s23, %s35
      %s37 = ssub.s32 %s24, %s31
      %s38 = sor.u32 %s36, %s37
      %p39 = scmp.eq.s32.totalorder %s38, 0
      %s41 = sadd.s32 %s40, 1
      %s42 = scalar_select %p39, %s40, %s41
      %p45 = pneg %p39
      %p46 = scmp.eq.s32.totalorder %s16, 1
      %p47 = por %p45, %p46
      %p48 = scmp.ne.s32.totalorder %s40, %s43
      %p49 = scmp.eq.s32.totalorder %s16, 0
      %p50 = por %p48, %p49
      %p51 = scmp.ne.s32.totalorder %s40, %s43
      %p52 = scmp.eq.s32.totalorder %s21, 1
      %p53 = por %p51, %p52
      %p54 = scmp.ne.s32.totalorder %s43, %s44
      %p55 = scmp.eq.s32.totalorder %s21, 0
      %p56 = por %p54, %p55
      %p57 = scmp.ne.s32.totalorder %s43, %s44
      %p58 = scmp.eq.s32.totalorder %s22, 1
      %p59 = por %p57, %p58
      %p61 = scmp.ne.s32.totalorder %s44, %s60
      %p62 = scmp.eq.s32.totalorder %s22, 0
      %p63 = por %p61, %p62
      %s65 = sadd.s32 %s64, 1
      %p68 = scmp.eq.s32.totalorder %s16, 1
      %p69 = scmp.ne.s32.totalorder %s64, %s66
      %p70 = scmp.eq.s32.totalorder %s16, 0
      %p71 = por %p69, %p70
      %p72 = scmp.ne.s32.totalorder %s64, %s66
      %p73 = scmp.eq.s32.totalorder %s21, 1
      %p74 = por %p72, %p73
      %p75 = scmp.ne.s32.totalorder %s66, %s67
      %p76 = scmp.eq.s32.totalorder %s21, 0
      %p77 = por %p75, %p76
      %p78 = scmp.ne.s32.totalorder %s66, %s67
      %p79 = scmp.eq.s32.totalorder %s22, 1
      %p80 = por %p78, %p79
      %p82 = scmp.ne.s32.totalorder %s67, %s81
      %p83 = scmp.eq.s32.totalorder %s22, 0
      %p84 = por %p82, %p83
      %s86 = sadd.s32 %s85, 1
      %p89 = scmp.eq.s32.totalorder %s16, 1
      %p90 = scmp.ne.s32.totalorder %s85, %s87
      %p91 = scmp.eq.s32.totalorder %s16, 0
      %p92 = por %p90, %p91
      %p93 = scmp.ne.s32.totalorder %s85, %s87
      %p94 = scmp.eq.s32.totalorder %s21, 1
      %p95 = por %p93, %p94
      %p96 = scmp.ne.s32.totalorder %s87, %s88
      %p97 = scmp.eq.s32.totalorder %s21, 0
      %p98 = por %p96, %p97
      %p99 = scmp.ne.s32.totalorder %s87, %s88
      %p100 = scmp.eq.s32.totalorder %s22, 1
      %p101 = por %p99, %p100
      %p103 = scmp.ne.s32.totalorder %s88, %s102
      %p104 = scmp.eq.s32.totalorder %s22, 0
      %p105 = por %p103, %p104
      %s107 = sadd.s32 %s106, 1
      %p110 = scmp.eq.s32.totalorder %s16, 1
      %p111 = scmp.ne.s32.totalorder %s106, %s108
      %p112 = scmp.eq.s32.totalorder %s16, 0
      %p113 = por %p111, %p112
      %p114 = scmp.ne.s32.totalorder %s106, %s108
      %p115 = scmp.eq.s32.totalorder %s21, 1
      %p116 = por %p114, %p115
      %p117 = scmp.ne.s32.totalorder %s108, %s109
      %p118 = scmp.eq.s32.totalorder %s21, 0
      %p119 = por %p117, %p118
      %p120 = scmp.ne.s32.totalorder %s108, %s109
      %p121 = scmp.eq.s32.totalorder %s22, 1
      %p122 = por %p120, %p121
      %p124 = scmp.ne.s32.totalorder %s109, %s123
      %p125 = scmp.eq.s32.totalorder %s22, 0
      %p126 = por %p124, %p125
      %s127 = ssub.s32 %s23, %s35
      %s128 = ssub.s32 %s24, %s31
      %s129 = sor.u32 %s127, %s128
      %p130 = scmp.eq.s32.totalorder %s129, 0
      %s132 = sadd.s32 %s131, 1
      %s133 = scalar_select %p130, %s131, %s132
      %p136 = pneg %p130
      %p137 = scmp.eq.s32.totalorder %s16, 1
      %p138 = por %p136, %p137
      %p139 = scmp.ne.s32.totalorder %s131, %s134
      %p140 = scmp.eq.s32.totalorder %s16, 0
      %p141 = por %p139, %p140
      %p142 = scmp.ne.s32.totalorder %s131, %s134
      %p143 = scmp.eq.s32.totalorder %s21, 1
      %p144 = por %p142, %p143
      %p145 = scmp.ne.s32.totalorder %s134, %s135
      %p146 = scmp.eq.s32.totalorder %s21, 0
      %p147 = por %p145, %p146
      %p148 = scmp.ne.s32.totalorder %s134, %s135
      %p149 = scmp.eq.s32.totalorder %s22, 1
      %p150 = por %p148, %p149
      %p152 = scmp.ne.s32.totalorder %s135, %s151
      %p153 = scmp.eq.s32.totalorder %s22, 0
      %p154 = por %p152, %p153
      %p155 = scmp.le.s32.totalorder 1, %s16
      %p156 = scmp.lt.s32.totalorder %s16, 3
      %p157 = pnand %p155, %p156
      %p158 = pneg %p157
      // Predicated region
      $region9: #{tpu_custom_call.1} parent=5 // pred_check
        _
      $region10: #{tpu_custom_call.1} parent=5 // pred_check_branch
        %160 = sbr.rel (%p157) target = $region12
      $region11: #{tpu_custom_call.1} parent=5 // pred_region
        %s161 = ssub.s32 %s16, 1
        // Predicated region
        $region13: #{tpu_custom_call.1} parent=11 // pred_check
          %p162 = pneg %p77
        $region14: #{tpu_custom_call.1} parent=11 // pred_check_branch
          %164 = sbr.rel (%p162) target = $region16
        $region15: #{tpu_custom_call.1} parent=11 // pred_region
          _
        $region16: #{tpu_custom_call.1} parent=11 // pred_fallthru
          _
        // Predicated region
        $region17: #{tpu_custom_call.1} parent=11 // pred_check
          %p165 = pneg %p98
        $region18: #{tpu_custom_call.1} parent=11 // pred_check_branch
          %167 = sbr.rel (%p165) target = $region20
        $region19: #{tpu_custom_call.1} parent=11 // pred_region
          _
        $region20: #{tpu_custom_call.1} parent=11 // pred_fallthru
          _
        // Predicated region
        $region21: #{tpu_custom_call.1} parent=11 // pred_check
          %p168 = pneg %p119
        $region22: #{tpu_custom_call.1} parent=11 // pred_check_branch
          %170 = sbr.rel (%p168) target = $region24
        $region23: #{tpu_custom_call.1} parent=11 // pred_region
          _
        $region24: #{tpu_custom_call.1} parent=11 // pred_fallthru
          _
      $region12: #{tpu_custom_call.1} parent=5 // pred_fallthru
        _
      %p171 = scmp.lt.s32.totalorder %s16, 2
      // Predicated region
      $region25: #{tpu_custom_call.1} parent=5 // pred_check
        %p172 = pneg %p171
      $region26: #{tpu_custom_call.1} parent=5 // pred_check_branch
        %174 = sbr.rel (%p172) target = $region28
      $region27: #{tpu_custom_call.1} parent=5 // pred_region
        // Predicated region
        $region29: #{tpu_custom_call.1} parent=27 // pred_check
          %p175 = pneg %p50
        $region30: #{tpu_custom_call.1} parent=27 // pred_check_branch
          %177 = sbr.rel (%p175) target = $region32
        $region31: #{tpu_custom_call.1} parent=27 // pred_region
          %s178 = sand.u32 %s40, 1
          %s179 = scalar_lea.sflag [#allocation3], %s178
          %s180 = sand.u32 %s40, 1
          %s181 = smul.addr %s180, 32
          %s182 = scalar_lea.vmem [#allocation2], %s181
          %s183 = smul.u32 2, %s24
          %185 = vsyncadd %s179, 0
          %s186 = smul.addr %s23, 4
          %s187 = sadd.s32 %s183, %s186
          %s188 = smul.addr %s187, 8
          %s189 = scalar_lea.hbm %s0, %s188
          %s190 = sshll.u32 %s189, 4
          %s191 = int_to_ptr.hbm [resolvable:$true] %s190
          %s192 = sshll.u32 %s182, 4
          %s193 = int_to_ptr.vmem [resolvable:$true] %s192
          %198 = dma.hbm_to_vmem [thread:$0]  %s191, 512, %s193, %s179, 256, 256, 16
        $region32: #{tpu_custom_call.1} parent=27 // pred_fallthru
          _
      $region28: #{tpu_custom_call.1} parent=5 // pred_fallthru
        _
      %p199 = scmp.le.s32.totalorder 1, %s16
      %p200 = scmp.lt.s32.totalorder %s16, 3
      %p201 = pnand %p199, %p200
      %p202 = pneg %p201
      // Predicated region
      $region33: #{tpu_custom_call.1} parent=5 // pred_check
        _
      $region34: #{tpu_custom_call.1} parent=5 // pred_check_branch
        %204 = sbr.rel (%p201) target = $region36
      $region35: #{tpu_custom_call.1} parent=5 // pred_region
        %s205 = ssub.s32 %s16, 1
        %s206 = sand.u32 %s43, 1
        %s207 = scalar_lea.sflag [#allocation3], %s206
        %s208 = sand.u32 %s43, 1
        %s209 = smul.addr %s208, 32
        %s210 = scalar_lea.vmem [#allocation2], %s209
        // Predicated region
        $region37: #{tpu_custom_call.1} parent=35 // pred_check
          %p211 = pneg %p56
        $region38: #{tpu_custom_call.1} parent=35 // pred_check_branch
          %213 = sbr.rel (%p211) target = $region40
        $region39: #{tpu_custom_call.1} parent=35 // pred_region
          %215 = dma.done %s207, 512
        $region40: #{tpu_custom_call.1} parent=35 // pred_fallthru
          _
        %s216 = sand.u32 %s43, 1
        %s217 = scalar_lea.sflag [#allocation3], %s216
        %s218 = sand.u32 %s43, 1
        %s219 = smul.addr %s218, 32
        %s220 = scalar_lea.vmem [#allocation2], %s219
        %p221 = pneg %p56
        %p222 = pneg %p53
        %p223 = pneg %p77
        %p224 = pneg %p74
        %p225 = pneg %p98
        %p226 = pneg %p95
        %p227 = pneg %p119
        %p228 = pneg %p116
        %p229 = pneg %p147
        %p230 = pneg %p144
        %s231 = sand.u32 %s134, 1
        %s232 = scalar_lea.sflag [#allocation4], %s231
        %s233 = sand.u32 %s134, 1
        %s234 = smul.addr %s233, 16
        %s235 = scalar_lea.vmem [#allocation5], %s234
        %s236 = smul.u32 2, %s26
        %s237 = smul.u32 2, %s26
        %v239 = vld [vmem:[%s210] sm:$0xff]
        %v240 = vld [vmem:[%s210 + $0x8] sm:$0xff]
        %v241 = vld [vmem:[%s210 + $0x10] sm:$0xff]
        %v242 = vld [vmem:[%s210 + $0x18] sm:$0xff]
        %v243 = vpack.c.bf16 %v241, %v239
        %v244 = vpack.c.bf16 %v242, %v240
        %v245 = vld [vmem:[%s1] sm:$0xf]
        %v246 = vld [vmem:[%s1 + $0x4] sm:$0xf]
        %v247 = vld [vmem:[%s2] sm:$0xff]
        %v248 = vld [vmem:[%s2 + $0x8] sm:$0xff]
        %250 = vset.pattern.permute.xlu0 0
        %251 = vperm.xlu0 %250, %v247
        %v252 = vpop.permute.xlu0 %251
        %255 = vset.pattern.permute.xlu0 0
        %256 = vperm.xlu0 %255, %v248
        %v257 = vpop.permute.xlu0 %256
        %v261 = vunpack.c.l.b16 %v245
        %v262 = vunpack.c.l.b16 %v246
        %v263 = vpack.c.b16 %v262, %v261
        %vm264 = vcmask 130048
        %v266 = vsel %vm264, %v263, 0
        %268 = vmatpush.bf16.msra.mxu0 0
        %269 = vmatpush.bf16.msra.mxu0 0
        %270 = vmatpush.bf16.msra.mxu0 0
        %271 = vmatpush.bf16.msra.mxu0 0
        %272 = vmatpush.bf16.msra.mxu0 0
        %273 = vmatpush.bf16.msra.mxu0 0
        %274 = vmatpush.bf16.msra.mxu0 0
        %275 = vmatpush.bf16.msra.mxu0 %v243
        %276 = vmatmul.bf16.gmra.mxu0 %v266
        %v277 = vpop.f32.mrf.mxu0
        %v278 = vadd.f32 %v252, %v277
        %v279 = vpop.f32.mrf.mxu0
        %v280 = vadd.f32 %v257, %v279
        %281 = vdwg.mxu0
        %282 = vmatpush.bf16.msra.mxu0 0
        %283 = vmatpush.bf16.msra.mxu0 0
        %284 = vmatpush.bf16.msra.mxu0 0
        %285 = vmatpush.bf16.msra.mxu0 0
        %286 = vmatpush.bf16.msra.mxu0 0
        %287 = vmatpush.bf16.msra.mxu0 0
        %288 = vmatpush.bf16.msra.mxu0 0
        %289 = vmatpush.bf16.msra.mxu0 %v244
        %290 = vmatmul.bf16.gmra.mxu0 %v266
        %v291 = vpop.f32.mrf.mxu0
        %v292 = vadd.f32 %v252, %v291
        %v293 = vpop.f32.mrf.mxu0
        %v294 = vadd.f32 %v257, %v293
        %295 = vdwg.mxu0
        %v296 = vmax.f32 %v278, 0.0
        %v297 = vmax.f32 %v292, 0.0
        %v298 = vmax.f32 %v280, 0.0
        %v299 = vmax.f32 %v294, 0.0
        %v300 = vld [vmem:[%s3] sm:$0xf]
        %v301 = vld [vmem:[%s3 + $0x4] sm:$0xf]
        %v302 = vpack.c.bf16 %v298, %v296
        %v303 = vpack.c.bf16 %v299, %v297
        %v306 = vunpack.c.l.b16 %v300
        %v307 = vunpack.c.l.b16 %v301
        %v308 = vpack.c.b16 %v307, %v306
        %v310 = vsel %vm264, %v308, 0
        %312 = vmatpush.bf16.msra.mxu0 0
        %313 = vmatpush.bf16.msra.mxu0 0
        %314 = vmatpush.bf16.msra.mxu0 0
        %315 = vmatpush.bf16.msra.mxu0 0
        %316 = vmatpush.bf16.msra.mxu0 0
        %317 = vmatpush.bf16.msra.mxu0 0
        %318 = vmatpush.bf16.msra.mxu0 0
        %319 = vmatpush.bf16.msra.mxu0 %v302
        %320 = vmatmul.bf16.gmra.mxu0 %v310
        %v321 = vpop.f32.mrf.mxu0
        %v322 = vadd.f32 0.0, %v321
        %v323 = vpop.f32.mrf.mxu0
        %v324 = vadd.f32 0.0, %v323
        %325 = vdwg.mxu0
        %326 = vmatpush.bf16.msra.mxu0 0
        %327 = vmatpush.bf16.msra.mxu0 0
        %328 = vmatpush.bf16.msra.mxu0 0
        %329 = vmatpush.bf16.msra.mxu0 0
        %330 = vmatpush.bf16.msra.mxu0 0
        %331 = vmatpush.bf16.msra.mxu0 0
        %332 = vmatpush.bf16.msra.mxu0 0
        %333 = vmatpush.bf16.msra.mxu0 %v303
        %334 = vmatmul.bf16.gmra.mxu0 %v310
        %v335 = vpop.f32.mrf.mxu0
        %v336 = vadd.f32 0.0, %v335
        %v337 = vpop.f32.mrf.mxu0
        %v338 = vadd.f32 0.0, %v337
        %339 = vdwg.mxu0
        %v340 = vpack.c.bf16 %v336, %v322
        %v341 = vpack.c.bf16 %v338, %v324
        %342 = vst [vmem:[%s235] sm:$0xff] %v340
        %343 = vst [vmem:[%s235 + $0x8] sm:$0xff] %v341
        %s344 = sand.u32 %s134, 1
        %s345 = scalar_lea.sflag [#allocation4], %s344
        %s346 = sand.u32 %s134, 1
        %s347 = smul.addr %s346, 16
        %s348 = scalar_lea.vmem [#allocation5], %s347
        // Predicated region
        $region41: #{tpu_custom_call.1} parent=35 // pred_check
          %p349 = pneg %p144
        $region42: #{tpu_custom_call.1} parent=35 // pred_check_branch
          %351 = sbr.rel (%p349) target = $region44
        $region43: #{tpu_custom_call.1} parent=35 // pred_region
          %s352 = smul.u32 2, %s26
          %354 = vsyncadd %s345, 0
          %s355 = smul.addr %s25, 4
          %s356 = sadd.s32 %s352, %s355
          %s357 = smul.addr %s356, 4
          %s358 = scalar_lea.hbm %s4, %s357
          %s359 = sshll.u32 %s348, 4
          %s360 = int_to_ptr.vmem [resolvable:$true] %s359
          %s361 = sshll.u32 %s358, 4
          %s362 = int_to_ptr.hbm [resolvable:$true] %s361
          %367 = dma.vmem_to_hbm [thread:$0]  %s360, 256, %s362, %s345, 128, 128, 8
        $region44: #{tpu_custom_call.1} parent=35 // pred_fallthru
          _
      $region36: #{tpu_custom_call.1} parent=5 // pred_fallthru
        _
      %p368 = scmp.le.s32.totalorder 2, %s16
      // Predicated region
      $region45: #{tpu_custom_call.1} parent=5 // pred_check
        %p369 = pneg %p368
      $region46: #{tpu_custom_call.1} parent=5 // pred_check_branch
        %371 = sbr.rel (%p369) target = $region48
      $region47: #{tpu_custom_call.1} parent=5 // pred_region
        %s372 = ssub.s32 %s16, 2
        // Predicated region
        $region49: #{tpu_custom_call.1} parent=47 // pred_check
          %p373 = pneg %p150
        $region50: #{tpu_custom_call.1} parent=47 // pred_check_branch
          %375 = sbr.rel (%p373) target = $region52
        $region51: #{tpu_custom_call.1} parent=47 // pred_region
          %s376 = sand.u32 %s135, 1
          %s377 = scalar_lea.sflag [#allocation4], %s376
          %s378 = sand.u32 %s135, 1
          %s379 = smul.addr %s378, 16
          %s380 = scalar_lea.vmem [#allocation5], %s379
          %382 = dma.done %s377, 256
        $region52: #{tpu_custom_call.1} parent=47 // pred_fallthru
          _
      $region48: #{tpu_custom_call.1} parent=5 // pred_fallthru
        _
    $region6: #{tpu_custom_call.1} parent=1 // loop_footer
      %s20 = sadd.s32 1, %s16
    $region7: #{tpu_custom_call.1} parent=1 // loop_footer_branch
      %15 = sbr.rel target = $region3
    $region8: #{tpu_custom_call.1} parent=1 // loop_exit
      _
    %383 = vsyncpa [#allocation3], 1
    %s384 = scalar_lea.sflag [#allocation3], 1
    %385 = vsyncpa %s384, 1
    %386 = vsyncpa [#allocation4], 1
    %s387 = scalar_lea.sflag [#allocation4], 1
    %388 = vsyncpa %s387, 1

</llo_original>
